<compile_context>
chip_gen: v5e
topology: v5e:2x2
jax: 0.10.0
libtpu: 0.0.40
codegen_flags: <defaults>
</compile_context>

<pallas_src>
import functools

import jax
import jax.numpy as jnp
from jax.experimental import pallas as pl
from jax.experimental.pallas import tpu as pltpu

LAYERS = [1, 20, 20, 20, 20, 20, 20, 20, 20, 20, 20, 2]
N_LIN = len(LAYERS) - 1       # 11 linear layers
HIDDEN = 20
# columns: [w0 | b0 | b1..b9 | b10(padded) | src(padded) | rcvr(padded)]
N_SMALL_COLS = 14

SRC = (0.05, 0.05)            # src  = [0.05, 0.05]
RCVR = (0.95, 1.0)            # rcvr = [0.95, 1.0]

LANE_CHUNK = 256              # inner lane-chunk so activations stay in vregs


def _softplus(z):
    # numerically stable softplus, matches torch.nn.Softplus (beta=1)
    return jnp.maximum(z, 0.0) + jnp.log1p(jnp.exp(-jnp.abs(z)))


def pinn_kernel(l_ref, w_ref, small_ref, out_ref):
    """One lane-tile of the whole MLP forward + boundary blend.

    l_ref:     (1, TILE)    f32  ray parameter lambda, samples on lanes
    w_ref:     (10, 20, 20) f32  weights of layers 1..9 + zero-padded layer 10
    small_ref: (20, 14)     f32  col 0 = layer-0 weight, cols 1..11 = b0..b10,
                                 col 12 = src (padded), col 13 = rcvr (padded)
    out_ref:   (2, TILE)    f32
    """
    small = small_ref[...]                           # (20, 14), resident
    w = w_ref[...]                                   # (10, 20, 20), resident

    w0 = small[:, 0:1]                               # (20, 1) layer-0 weight
    b0 = small[:, 1:2]                               # (20, 1) layer-0 bias
    src = small[0:2, 12:13]                          # (2, 1)
    rcvr = small[0:2, 13:14]                         # (2, 1)

    tile = l_ref.shape[1]
    chunk = min(LANE_CHUNK, tile)
    n_chunks = tile // chunk

    # Run all 11 layers per lane chunk so the (20, chunk) activations stay
    # vreg-resident (no per-layer VMEM round trips).
    for c in range(n_chunks):
        lo, hi = c * chunk, (c + 1) * chunk
        L = l_ref[:, lo:hi]                          # (1, chunk)

        # ---- layer 0 (1 -> 20): outer-product broadcast on the VPU ----
        a = _softplus(w0 * L + b0)                   # (20, chunk)

        # ---- layers 1..9 (20 -> 20) + softplus ----
        for i in range(9):
            z = jnp.dot(w[i], a, preferred_element_type=jnp.float32)
            a = _softplus(z + small[:, 2 + i:3 + i])  # bias b_{i+1}

        # ---- layer 10 (20 -> 2): zero-padded to 20x20, keep first 2 rows ----
        z = jnp.dot(w[9], a, preferred_element_type=jnp.float32)   # (20, chunk)
        a_last = z[0:2, :] + small[0:2, 11:12]       # (2, chunk)

        # ---- boundary-conforming blend ----
        out_ref[:, lo:hi] = (1.0 - L) * src + L * rcvr + L * (1.0 - L) * a_last


def _round_up(x, m):
    return ((x + m - 1) // m) * m


def pack_params(weights, biases):
    """weights[i]: torch layout (out_i, in_i); biases[i]: (out_i,).

    Returns (w_packed (10,20,20), small (20,14)) float32.  Call ONCE when the
    weights are set; do not re-pack per forward call.
    """
    w_hidden = jnp.stack(
        [jnp.asarray(weights[i], jnp.float32) for i in range(1, 10)], axis=0)   # (9,20,20)
    w_last = jnp.zeros((HIDDEN, HIDDEN), jnp.float32)
    w_last = w_last.at[0:2, :].set(jnp.asarray(weights[10], jnp.float32))       # pad (2,20)
    w_packed = jnp.concatenate([w_hidden, w_last[None]], axis=0)                # (10,20,20)

    def col(v):
        v = jnp.asarray(v, jnp.float32).reshape(-1)
        return jnp.zeros((HIDDEN,), jnp.float32).at[: v.shape[0]].set(v)

    cols = [col(jnp.asarray(weights[0], jnp.float32)[:, 0])]   # layer-0 weight
    for i in range(10):
        cols.append(col(biases[i]))                            # b0..b9
    cols.append(col(biases[10]))                               # b10 (padded)
    cols.append(col(jnp.array(SRC, jnp.float32)))              # src (padded)
    cols.append(col(jnp.array(RCVR, jnp.float32)))             # rcvr (padded)
    small = jnp.stack(cols, axis=1)                            # (20, 14)

    return w_packed, small


@functools.partial(jax.jit, static_argnames=("tile",))
def pinn_apply(L, w_packed, small, *, tile=8192):
    """Jitted forward. L: (N,) or (N,1). Returns (N, 2)."""
    L = jnp.asarray(L, jnp.float32).reshape(-1)
    n = L.shape[0]

    # Samples on the lane axis: pad N up to a multiple of 128.
    n_pad128 = _round_up(max(n, 1), 128)
    t = min(tile, n_pad128)
    # v7x has 2 TensorCores; the "parallel" grid axis only shards across them
    # with >= 2 steps.  Cap the tile accordingly when N is large enough.
    if n_pad128 >= 2 * 128:
        t = min(t, _round_up(n_pad128 // 2, 128))
    t = max(128, (t // 128) * 128)

    n_pad = _round_up(n_pad128, t)
    grid = (n_pad // t,)

    L_pad = jnp.pad(L[None, :], ((0, 0), (0, n_pad - n)))      # (1, n_pad)

    out = pl.pallas_call(
        pinn_kernel,
        out_shape=jax.ShapeDtypeStruct((2, n_pad), jnp.float32),
        grid=grid,
        in_specs=[
            pl.BlockSpec((1, t), lambda i: (0, i)),                   # lambda tile
            pl.BlockSpec((10, HIDDEN, HIDDEN), lambda i: (0, 0, 0)),  # weights, resident
            pl.BlockSpec((HIDDEN, N_SMALL_COLS), lambda i: (0, 0)),   # small params, resident
        ],
        out_specs=pl.BlockSpec((2, t), lambda i: (0, i)),
        compiler_params=pltpu.CompilerParams(
            dimension_semantics=("parallel",),
            vmem_limit_bytes=64 << 20),
    )(L_pad, w_packed, small)

    # Kernel emits a lane-dense (2, n_pad) slab; slice + transpose are fused
    # under this jit so the consumer still sees the module's (N, 2) layout.
    return out[:, :n].T


def pinn_forward(L, weights, biases, *, tile=8192):
    """Convenience wrapper: packs params then calls the jitted apply.

    Prefer calling pack_params once and pinn_apply directly in hot loops.
    """
    w_packed, small = pack_params(weights, biases)
    return pinn_apply(L, w_packed, small, tile=tile)


def init_params(key):
    """Xavier-normal init (gain=0.5), zero biases — matches the module __init__.

    Weights are kept in torch layout (out, in).
    """
    weights, biases = [], []
    for i in range(N_LIN):
        fan_in, fan_out = LAYERS[i], LAYERS[i + 1]
        key, sub = jax.random.split(key)
        std = 0.5 * (2.0 / (fan_in + fan_out)) ** 0.5
        w = std * jax.random.normal(sub, (fan_out, fan_in), dtype=jnp.float32)
        b = jnp.zeros((fan_out,), dtype=jnp.float32)
        weights.append(w)
        biases.append(b)
    return weights, biases


def pinn_forward_ref(L, weights, biases):
    """Pure-JAX reference of the same forward pass (for verification)."""
    L = jnp.asarray(L, jnp.float32).reshape(-1, 1)
    src = jnp.array([list(SRC)], jnp.float32)
    rcvr = jnp.array([list(RCVR)], jnp.float32)
    a = L
    for i in range(N_LIN - 1):
        a = _softplus(a @ weights[i].T + biases[i][None, :])
    a = a @ weights[-1].T + biases[-1][None, :]
    return (1.0 - L) * src + L * rcvr + L * (1.0 - L) * a


if __name__ == "__main__":
    key = jax.random.PRNGKey(0)
    weights, biases = init_params(key)

    # Pack once (hoisted out of the per-call path).
    w_packed, small = pack_params(weights, biases)
    w_packed = jax.block_until_ready(w_packed)
    small = jax.block_until_ready(small)

    # Lambda = np.linspace(0, 1, 101) in the original script.
    L = jnp.linspace(0.0, 1.0, 101, dtype=jnp.float32)

    out = pinn_apply(L, w_packed, small)
    out = jax.block_until_ready(out)

    ref = pinn_forward_ref(L, weights, biases)
    assert out.shape == (101, 2)
    assert jnp.allclose(out, ref, atol=1e-5, rtol=1e-4), "mismatch vs JAX reference"

    print("KERNEL_OK")
</pallas_src>

<mosaic_0001>
module attributes {stable_mosaic.version = 11 : i64} {
  func.func @pinn_kernel(%arg0: i32, %arg1: memref<1x128xf32, #tpu.memory_space<vmem>>, %arg2: memref<10x20x20xf32, #tpu.memory_space<vmem>>, %arg3: memref<20x14xf32, #tpu.memory_space<vmem>>, %arg4: memref<2x128xf32, #tpu.memory_space<vmem>>) attributes {dimension_semantics = [#tpu.dimension_semantics<parallel>], iteration_bounds = array<i64: 1>, scalar_prefetch = 0 : i64, scratch_operands = 0 : i64, tpu.core_type = #tpu.core_type<tc>, window_params = [{transform_indices = @transform_0, window_bounds = array<i64: 1, 128>}, {pipeline_mode = #tpu.pipeline_mode<synchronous>, transform_indices = @transform_1, window_bounds = array<i64: 10, 20, 20>}, {pipeline_mode = #tpu.pipeline_mode<synchronous>, transform_indices = @transform_2, window_bounds = array<i64: 20, 14>}, {transform_indices = @transform_3, window_bounds = array<i64: 2, 128>}]} {
    %c0 = arith.constant 0 : index
    %c0_0 = arith.constant 0 : index
    %0 = vector.load %arg3[%c0, %c0_0] : memref<20x14xf32, #tpu.memory_space<vmem>>, vector<20x14xf32>
    %c0_1 = arith.constant 0 : index
    %c0_2 = arith.constant 0 : index
    %c0_3 = arith.constant 0 : index
    %1 = vector.load %arg2[%c0_1, %c0_2, %c0_3] : memref<10x20x20xf32, #tpu.memory_space<vmem>>, vector<10x20x20xf32>
    %2 = vector.extract_strided_slice %0 {offsets = [0, 0], sizes = [20, 1], strides = [1, 1]} : vector<20x14xf32> to vector<20x1xf32>
    %3 = vector.extract_strided_slice %0 {offsets = [0, 1], sizes = [20, 1], strides = [1, 1]} : vector<20x14xf32> to vector<20x1xf32>
    %4 = vector.extract_strided_slice %0 {offsets = [0, 12], sizes = [2, 1], strides = [1, 1]} : vector<20x14xf32> to vector<2x1xf32>
    %5 = vector.extract_strided_slice %0 {offsets = [0, 13], sizes = [2, 1], strides = [1, 1]} : vector<20x14xf32> to vector<2x1xf32>
    %c0_4 = arith.constant 0 : index
    %c0_5 = arith.constant 0 : index
    %6 = vector.load %arg1[%c0_4, %c0_5] : memref<1x128xf32, #tpu.memory_space<vmem>>, vector<1x128xf32>
    %7 = vector.broadcast %2 : vector<20x1xf32> to vector<20x128xf32>
    %8 = vector.broadcast %6 : vector<1x128xf32> to vector<20x128xf32>
    %9 = arith.mulf %7, %8 : vector<20x128xf32>
    %10 = vector.broadcast %3 : vector<20x1xf32> to vector<20x128xf32>
    %11 = arith.addf %9, %10 : vector<20x128xf32>
    %cst = arith.constant 0.000000e+00 : f32
    %12 = vector.broadcast %cst : f32 to vector<20x128xf32>
    %13 = arith.maximumf %11, %12 : vector<20x128xf32>
    %14 = math.absf %11 : vector<20x128xf32>
    %cst_6 = arith.constant 0.000000e+00 : f32
    %15 = vector.broadcast %cst_6 : f32 to vector<20x128xf32>
    %16 = arith.subf %15, %14 : vector<20x128xf32>
    %17 = math.exp %16 : vector<20x128xf32>
    %18 = math.log1p %17 : vector<20x128xf32>
    %19 = arith.addf %13, %18 : vector<20x128xf32>
    %20 = vector.extract_strided_slice %1 {offsets = [0, 0, 0], sizes = [1, 20, 20], strides = [1, 1, 1]} : vector<10x20x20xf32> to vector<1x20x20xf32>
    %21 = vector.shape_cast %20 : vector<1x20x20xf32> to vector<20x20xf32>
    %cst_7 = arith.constant dense<0.000000e+00> : vector<20x128xf32>
    %22 = tpu.matmul %21, %19, %cst_7 {dimension_numbers = #tpu.dot_dimension_numbers<[1], [0], [0], [1], [0, 0, 1, 1], [], []>} : vector<20x20xf32>, vector<20x128xf32>, vector<20x128xf32> -> vector<20x128xf32>
    %23 = vector.extract_strided_slice %0 {offsets = [0, 2], sizes = [20, 1], strides = [1, 1]} : vector<20x14xf32> to vector<20x1xf32>
    %24 = vector.broadcast %23 : vector<20x1xf32> to vector<20x128xf32>
    %25 = arith.addf %22, %24 : vector<20x128xf32>
    %cst_8 = arith.constant 0.000000e+00 : f32
    %26 = vector.broadcast %cst_8 : f32 to vector<20x128xf32>
    %27 = arith.maximumf %25, %26 : vector<20x128xf32>
    %28 = math.absf %25 : vector<20x128xf32>
    %cst_9 = arith.constant 0.000000e+00 : f32
    %29 = vector.broadcast %cst_9 : f32 to vector<20x128xf32>
    %30 = arith.subf %29, %28 : vector<20x128xf32>
    %31 = math.exp %30 : vector<20x128xf32>
    %32 = math.log1p %31 : vector<20x128xf32>
    %33 = arith.addf %27, %32 : vector<20x128xf32>
    %34 = vector.extract_strided_slice %1 {offsets = [1, 0, 0], sizes = [1, 20, 20], strides = [1, 1, 1]} : vector<10x20x20xf32> to vector<1x20x20xf32>
    %35 = vector.shape_cast %34 : vector<1x20x20xf32> to vector<20x20xf32>
    %cst_10 = arith.constant dense<0.000000e+00> : vector<20x128xf32>
    %36 = tpu.matmul %35, %33, %cst_10 {dimension_numbers = #tpu.dot_dimension_numbers<[1], [0], [0], [1], [0, 0, 1, 1], [], []>} : vector<20x20xf32>, vector<20x128xf32>, vector<20x128xf32> -> vector<20x128xf32>
    %37 = vector.extract_strided_slice %0 {offsets = [0, 3], sizes = [20, 1], strides = [1, 1]} : vector<20x14xf32> to vector<20x1xf32>
    %38 = vector.broadcast %37 : vector<20x1xf32> to vector<20x128xf32>
    %39 = arith.addf %36, %38 : vector<20x128xf32>
    %cst_11 = arith.constant 0.000000e+00 : f32
    %40 = vector.broadcast %cst_11 : f32 to vector<20x128xf32>
    %41 = arith.maximumf %39, %40 : vector<20x128xf32>
    %42 = math.absf %39 : vector<20x128xf32>
    %cst_12 = arith.constant 0.000000e+00 : f32
    %43 = vector.broadcast %cst_12 : f32 to vector<20x128xf32>
    %44 = arith.subf %43, %42 : vector<20x128xf32>
    %45 = math.exp %44 : vector<20x128xf32>
    %46 = math.log1p %45 : vector<20x128xf32>
    %47 = arith.addf %41, %46 : vector<20x128xf32>
    %48 = vector.extract_strided_slice %1 {offsets = [2, 0, 0], sizes = [1, 20, 20], strides = [1, 1, 1]} : vector<10x20x20xf32> to vector<1x20x20xf32>
    %49 = vector.shape_cast %48 : vector<1x20x20xf32> to vector<20x20xf32>
    %cst_13 = arith.constant dense<0.000000e+00> : vector<20x128xf32>
    %50 = tpu.matmul %49, %47, %cst_13 {dimension_numbers = #tpu.dot_dimension_numbers<[1], [0], [0], [1], [0, 0, 1, 1], [], []>} : vector<20x20xf32>, vector<20x128xf32>, vector<20x128xf32> -> vector<20x128xf32>
    %51 = vector.extract_strided_slice %0 {offsets = [0, 4], sizes = [20, 1], strides = [1, 1]} : vector<20x14xf32> to vector<20x1xf32>
    %52 = vector.broadcast %51 : vector<20x1xf32> to vector<20x128xf32>
    %53 = arith.addf %50, %52 : vector<20x128xf32>
    %cst_14 = arith.constant 0.000000e+00 : f32
    %54 = vector.broadcast %cst_14 : f32 to vector<20x128xf32>
    %55 = arith.maximumf %53, %54 : vector<20x128xf32>
    %56 = math.absf %53 : vector<20x128xf32>
    %cst_15 = arith.constant 0.000000e+00 : f32
    %57 = vector.broadcast %cst_15 : f32 to vector<20x128xf32>
    %58 = arith.subf %57, %56 : vector<20x128xf32>
    %59 = math.exp %58 : vector<20x128xf32>
    %60 = math.log1p %59 : vector<20x128xf32>
    %61 = arith.addf %55, %60 : vector<20x128xf32>
    %62 = vector.extract_strided_slice %1 {offsets = [3, 0, 0], sizes = [1, 20, 20], strides = [1, 1, 1]} : vector<10x20x20xf32> to vector<1x20x20xf32>
    %63 = vector.shape_cast %62 : vector<1x20x20xf32> to vector<20x20xf32>
    %cst_16 = arith.constant dense<0.000000e+00> : vector<20x128xf32>
    %64 = tpu.matmul %63, %61, %cst_16 {dimension_numbers = #tpu.dot_dimension_numbers<[1], [0], [0], [1], [0, 0, 1, 1], [], []>} : vector<20x20xf32>, vector<20x128xf32>, vector<20x128xf32> -> vector<20x128xf32>
    %65 = vector.extract_strided_slice %0 {offsets = [0, 5], sizes = [20, 1], strides = [1, 1]} : vector<20x14xf32> to vector<20x1xf32>
    %66 = vector.broadcast %65 : vector<20x1xf32> to vector<20x128xf32>
    %67 = arith.addf %64, %66 : vector<20x128xf32>
    %cst_17 = arith.constant 0.000000e+00 : f32
    %68 = vector.broadcast %cst_17 : f32 to vector<20x128xf32>
    %69 = arith.maximumf %67, %68 : vector<20x128xf32>
    %70 = math.absf %67 : vector<20x128xf32>
    %cst_18 = arith.constant 0.000000e+00 : f32
    %71 = vector.broadcast %cst_18 : f32 to vector<20x128xf32>
    %72 = arith.subf %71, %70 : vector<20x128xf32>
    %73 = math.exp %72 : vector<20x128xf32>
    %74 = math.log1p %73 : vector<20x128xf32>
    %75 = arith.addf %69, %74 : vector<20x128xf32>
    %76 = vector.extract_strided_slice %1 {offsets = [4, 0, 0], sizes = [1, 20, 20], strides = [1, 1, 1]} : vector<10x20x20xf32> to vector<1x20x20xf32>
    %77 = vector.shape_cast %76 : vector<1x20x20xf32> to vector<20x20xf32>
    %cst_19 = arith.constant dense<0.000000e+00> : vector<20x128xf32>
    %78 = tpu.matmul %77, %75, %cst_19 {dimension_numbers = #tpu.dot_dimension_numbers<[1], [0], [0], [1], [0, 0, 1, 1], [], []>} : vector<20x20xf32>, vector<20x128xf32>, vector<20x128xf32> -> vector<20x128xf32>
    %79 = vector.extract_strided_slice %0 {offsets = [0, 6], sizes = [20, 1], strides = [1, 1]} : vector<20x14xf32> to vector<20x1xf32>
    %80 = vector.broadcast %79 : vector<20x1xf32> to vector<20x128xf32>
    %81 = arith.addf %78, %80 : vector<20x128xf32>
    %cst_20 = arith.constant 0.000000e+00 : f32
    %82 = vector.broadcast %cst_20 : f32 to vector<20x128xf32>
    %83 = arith.maximumf %81, %82 : vector<20x128xf32>
    %84 = math.absf %81 : vector<20x128xf32>
    %cst_21 = arith.constant 0.000000e+00 : f32
    %85 = vector.broadcast %cst_21 : f32 to vector<20x128xf32>
    %86 = arith.subf %85, %84 : vector<20x128xf32>
    %87 = math.exp %86 : vector<20x128xf32>
    %88 = math.log1p %87 : vector<20x128xf32>
    %89 = arith.addf %83, %88 : vector<20x128xf32>
    %90 = vector.extract_strided_slice %1 {offsets = [5, 0, 0], sizes = [1, 20, 20], strides = [1, 1, 1]} : vector<10x20x20xf32> to vector<1x20x20xf32>
    %91 = vector.shape_cast %90 : vector<1x20x20xf32> to vector<20x20xf32>
    %cst_22 = arith.constant dense<0.000000e+00> : vector<20x128xf32>
    %92 = tpu.matmul %91, %89, %cst_22 {dimension_numbers = #tpu.dot_dimension_numbers<[1], [0], [0], [1], [0, 0, 1, 1], [], []>} : vector<20x20xf32>, vector<20x128xf32>, vector<20x128xf32> -> vector<20x128xf32>
    %93 = vector.extract_strided_slice %0 {offsets = [0, 7], sizes = [20, 1], strides = [1, 1]} : vector<20x14xf32> to vector<20x1xf32>
    %94 = vector.broadcast %93 : vector<20x1xf32> to vector<20x128xf32>
    %95 = arith.addf %92, %94 : vector<20x128xf32>
    %cst_23 = arith.constant 0.000000e+00 : f32
    %96 = vector.broadcast %cst_23 : f32 to vector<20x128xf32>
    %97 = arith.maximumf %95, %96 : vector<20x128xf32>
    %98 = math.absf %95 : vector<20x128xf32>
    %cst_24 = arith.constant 0.000000e+00 : f32
    %99 = vector.broadcast %cst_24 : f32 to vector<20x128xf32>
    %100 = arith.subf %99, %98 : vector<20x128xf32>
    %101 = math.exp %100 : vector<20x128xf32>
    %102 = math.log1p %101 : vector<20x128xf32>
    %103 = arith.addf %97, %102 : vector<20x128xf32>
    %104 = vector.extract_strided_slice %1 {offsets = [6, 0, 0], sizes = [1, 20, 20], strides = [1, 1, 1]} : vector<10x20x20xf32> to vector<1x20x20xf32>
    %105 = vector.shape_cast %104 : vector<1x20x20xf32> to vector<20x20xf32>
    %cst_25 = arith.constant dense<0.000000e+00> : vector<20x128xf32>
    %106 = tpu.matmul %105, %103, %cst_25 {dimension_numbers = #tpu.dot_dimension_numbers<[1], [0], [0], [1], [0, 0, 1, 1], [], []>} : vector<20x20xf32>, vector<20x128xf32>, vector<20x128xf32> -> vector<20x128xf32>
    %107 = vector.extract_strided_slice %0 {offsets = [0, 8], sizes = [20, 1], strides = [1, 1]} : vector<20x14xf32> to vector<20x1xf32>
    %108 = vector.broadcast %107 : vector<20x1xf32> to vector<20x128xf32>
    %109 = arith.addf %106, %108 : vector<20x128xf32>
    %cst_26 = arith.constant 0.000000e+00 : f32
    %110 = vector.broadcast %cst_26 : f32 to vector<20x128xf32>
    %111 = arith.maximumf %109, %110 : vector<20x128xf32>
    %112 = math.absf %109 : vector<20x128xf32>
    %cst_27 = arith.constant 0.000000e+00 : f32
    %113 = vector.broadcast %cst_27 : f32 to vector<20x128xf32>
    %114 = arith.subf %113, %112 : vector<20x128xf32>
    %115 = math.exp %114 : vector<20x128xf32>
    %116 = math.log1p %115 : vector<20x128xf32>
    %117 = arith.addf %111, %116 : vector<20x128xf32>
    %118 = vector.extract_strided_slice %1 {offsets = [7, 0, 0], sizes = [1, 20, 20], strides = [1, 1, 1]} : vector<10x20x20xf32> to vector<1x20x20xf32>
    %119 = vector.shape_cast %118 : vector<1x20x20xf32> to vector<20x20xf32>
    %cst_28 = arith.constant dense<0.000000e+00> : vector<20x128xf32>
    %120 = tpu.matmul %119, %117, %cst_28 {dimension_numbers = #tpu.dot_dimension_numbers<[1], [0], [0], [1], [0, 0, 1, 1], [], []>} : vector<20x20xf32>, vector<20x128xf32>, vector<20x128xf32> -> vector<20x128xf32>
    %121 = vector.extract_strided_slice %0 {offsets = [0, 9], sizes = [20, 1], strides = [1, 1]} : vector<20x14xf32> to vector<20x1xf32>
    %122 = vector.broadcast %121 : vector<20x1xf32> to vector<20x128xf32>
    %123 = arith.addf %120, %122 : vector<20x128xf32>
    %cst_29 = arith.constant 0.000000e+00 : f32
    %124 = vector.broadcast %cst_29 : f32 to vector<20x128xf32>
    %125 = arith.maximumf %123, %124 : vector<20x128xf32>
    %126 = math.absf %123 : vector<20x128xf32>
    %cst_30 = arith.constant 0.000000e+00 : f32
    %127 = vector.broadcast %cst_30 : f32 to vector<20x128xf32>
    %128 = arith.subf %127, %126 : vector<20x128xf32>
    %129 = math.exp %128 : vector<20x128xf32>
    %130 = math.log1p %129 : vector<20x128xf32>
    %131 = arith.addf %125, %130 : vector<20x128xf32>
    %132 = vector.extract_strided_slice %1 {offsets = [8, 0, 0], sizes = [1, 20, 20], strides = [1, 1, 1]} : vector<10x20x20xf32> to vector<1x20x20xf32>
    %133 = vector.shape_cast %132 : vector<1x20x20xf32> to vector<20x20xf32>
    %cst_31 = arith.constant dense<0.000000e+00> : vector<20x128xf32>
    %134 = tpu.matmul %133, %131, %cst_31 {dimension_numbers = #tpu.dot_dimension_numbers<[1], [0], [0], [1], [0, 0, 1, 1], [], []>} : vector<20x20xf32>, vector<20x128xf32>, vector<20x128xf32> -> vector<20x128xf32>
    %135 = vector.extract_strided_slice %0 {offsets = [0, 10], sizes = [20, 1], strides = [1, 1]} : vector<20x14xf32> to vector<20x1xf32>
    %136 = vector.broadcast %135 : vector<20x1xf32> to vector<20x128xf32>
    %137 = arith.addf %134, %136 : vector<20x128xf32>
    %cst_32 = arith.constant 0.000000e+00 : f32
    %138 = vector.broadcast %cst_32 : f32 to vector<20x128xf32>
    %139 = arith.maximumf %137, %138 : vector<20x128xf32>
    %140 = math.absf %137 : vector<20x128xf32>
    %cst_33 = arith.constant 0.000000e+00 : f32
    %141 = vector.broadcast %cst_33 : f32 to vector<20x128xf32>
    %142 = arith.subf %141, %140 : vector<20x128xf32>
    %143 = math.exp %142 : vector<20x128xf32>
    %144 = math.log1p %143 : vector<20x128xf32>
    %145 = arith.addf %139, %144 : vector<20x128xf32>
    %146 = vector.extract_strided_slice %1 {offsets = [9, 0, 0], sizes = [1, 20, 20], strides = [1, 1, 1]} : vector<10x20x20xf32> to vector<1x20x20xf32>
    %147 = vector.shape_cast %146 : vector<1x20x20xf32> to vector<20x20xf32>
    %cst_34 = arith.constant dense<0.000000e+00> : vector<20x128xf32>
    %148 = tpu.matmul %147, %145, %cst_34 {dimension_numbers = #tpu.dot_dimension_numbers<[1], [0], [0], [1], [0, 0, 1, 1], [], []>} : vector<20x20xf32>, vector<20x128xf32>, vector<20x128xf32> -> vector<20x128xf32>
    %149 = vector.extract_strided_slice %148 {offsets = [0, 0], sizes = [2, 128], strides = [1, 1]} : vector<20x128xf32> to vector<2x128xf32>
    %150 = vector.extract_strided_slice %0 {offsets = [0, 11], sizes = [2, 1], strides = [1, 1]} : vector<20x14xf32> to vector<2x1xf32>
    %151 = vector.broadcast %150 : vector<2x1xf32> to vector<2x128xf32>
    %152 = arith.addf %149, %151 : vector<2x128xf32>
    %cst_35 = arith.constant 1.000000e+00 : f32
    %153 = vector.broadcast %cst_35 : f32 to vector<1x128xf32>
    %154 = arith.subf %153, %6 : vector<1x128xf32>
    %155 = vector.broadcast %154 : vector<1x128xf32> to vector<2x128xf32>
    %156 = vector.broadcast %4 : vector<2x1xf32> to vector<2x128xf32>
    %157 = arith.mulf %155, %156 : vector<2x128xf32>
    %158 = vector.broadcast %6 : vector<1x128xf32> to vector<2x128xf32>
    %159 = vector.broadcast %5 : vector<2x1xf32> to vector<2x128xf32>
    %160 = arith.mulf %158, %159 : vector<2x128xf32>
    %161 = arith.addf %157, %160 : vector<2x128xf32>
    %cst_36 = arith.constant 1.000000e+00 : f32
    %162 = vector.broadcast %cst_36 : f32 to vector<1x128xf32>
    %163 = arith.subf %162, %6 : vector<1x128xf32>
    %164 = arith.mulf %6, %163 : vector<1x128xf32>
    %165 = vector.broadcast %164 : vector<1x128xf32> to vector<2x128xf32>
    %166 = arith.mulf %165, %152 : vector<2x128xf32>
    %167 = arith.addf %161, %166 : vector<2x128xf32>
    %c0_37 = arith.constant 0 : index
    %c0_38 = arith.constant 0 : index
    %168 = vector.load %arg4[%c0_37, %c0_38] : memref<2x128xf32, #tpu.memory_space<vmem>>, vector<2x128xf32>
    tpu.vector_store %arg4[%c0_37, %c0_38], %167 {strides = array<i32>} : memref<2x128xf32, #tpu.memory_space<vmem>>, vector<2x128xf32>,
    return
  }
  func.func @transform_0(%arg0: i32) -> (i32, i32) {
    %c0_i32 = arith.constant 0 : i32
    %c0_i32_0 = arith.constant 0 : i32
    return %c0_i32, %arg0 : i32, i32
  }
  func.func @transform_1(%arg0: i32) -> (i32, i32, i32) {
    %c0_i32 = arith.constant 0 : i32
    %c0_i32_0 = arith.constant 0 : i32
    %c0_i32_1 = arith.constant 0 : i32
    %c0_i32_2 = arith.constant 0 : i32
    return %c0_i32, %c0_i32_0, %c0_i32_1 : i32, i32, i32
  }
  func.func @transform_2(%arg0: i32) -> (i32, i32) {
    %c0_i32 = arith.constant 0 : i32
    %c0_i32_0 = arith.constant 0 : i32
    %c0_i32_1 = arith.constant 0 : i32
    return %c0_i32, %c0_i32_0 : i32, i32
  }
  func.func @transform_3(%arg0: i32) -> (i32, i32) {
    %c0_i32 = arith.constant 0 : i32
    %c0_i32_0 = arith.constant 0 : i32
    return %c0_i32, %arg0 : i32, i32
  }
}

</mosaic_0001>

<llo_original>
// kernel: pinn_apply.1
$region0: #{pinn_apply.1}
  #allocation0 [shape = 'u32[]', space=smem, size = 0x4, offset = 0x4, fixed_abs, tag = 'smem constant byte address 0x4 - core index']
  #allocation1 [shape = 'u32[72,128]{1,0:T(1,128)}', space=vmem, size = 0x9000, scoped, tag = 'internal scratch']
  %s0 = inlined_call_operand.vmem [shape: f32[1,128], index: 0, kind: input, shape index: {}]
  %s1 = inlined_call_operand.hbm [shape: f32[10,20,20], index: 1, kind: input, shape index: {}]
  %s2 = inlined_call_operand.vmem [shape: f32[20,14], index: 2, kind: input, shape index: {}]
  %s3 = inlined_call_operand.vmem [shape: f32[2,128], index: 3, kind: output, shape index: {}]
  %s4 = sld [smem:[#allocation0]]
  $region26: #{pinn_apply.1} parent=0
    _
  %s6 = ssub.s32 1, %s4
  %s7 = scalar_select 0, %s6, %s4
  $region1: #{pinn_apply.1} parent=0
    #allocation2 [shape = 'u8[122880]{0}', space=vmem, size = 0x1e000, scoped, tag = 'input window, operand 1, single buffered']
    #allocation3 [shape = 's32[1]{0}', space=sflag, size = 0x4, scoped, tag = 'scoped memory for pinn_apply.1']
    %8 = vsyncpa [#allocation3], 0
    // Predicated region
    $region2: #{pinn_apply.1} parent=1 // pred_check
      _
    $region3: #{pinn_apply.1} parent=1 // pred_check_branch
      %10 = sbr.rel (0) target = $region5
    $region4: #{pinn_apply.1} parent=1 // pred_region
      _
    $region5: #{pinn_apply.1} parent=1 // pred_fallthru
      _
    // Predicated region
    $region6: #{pinn_apply.1} parent=1 // pred_check
      _
    $region7: #{pinn_apply.1} parent=1 // pred_check_branch
      %12 = sbr.rel (0) target = $region9
    $region8: #{pinn_apply.1} parent=1 // pred_region
      %14 = vsyncadd [#allocation3], 0
      %s15 = sshll.u32 %s1, 4
      %s16 = int_to_ptr.hbm [resolvable:$true] %s15
      %s17 = sshll.u32 [#allocation2], 4
      %s18 = int_to_ptr.vmem [resolvable:$true] %s17
      %23 = dma.hbm_to_vmem [thread:$0]  %s16, 3840, %s18, [#allocation3], 128, 128, 8
    $region9: #{pinn_apply.1} parent=1 // pred_fallthru
      _
    // Predicated region
    $region10: #{pinn_apply.1} parent=1 // pred_check
      _
    $region11: #{pinn_apply.1} parent=1 // pred_check_branch
      %25 = sbr.rel (0) target = $region13
    $region12: #{pinn_apply.1} parent=1 // pred_region
      _
    $region13: #{pinn_apply.1} parent=1 // pred_fallthru
      _
    // Predicated region
    $region14: #{pinn_apply.1} parent=1 // pred_check
      _
    $region15: #{pinn_apply.1} parent=1 // pred_check_branch
      %27 = sbr.rel (0) target = $region17
    $region16: #{pinn_apply.1} parent=1 // pred_region
      %29 = dma.done [#allocation3], 3840
    $region17: #{pinn_apply.1} parent=1 // pred_fallthru
      _
    %v30 = vld [vmem:[%s2] sm:$0xff]
    %v31 = vld [vmem:[%s2 + $0x8] sm:$0xff]
    %v32 = vld [vmem:[%s2 + $0x10] sm:$0xf]
    %v33 = vld [vmem:[#allocation2] sm:$0xff]
    %v34 = vld [vmem:[#allocation2 + $0x8] sm:$0xff]
    %v35 = vld [vmem:[#allocation2 + $0x10] sm:$0xf]
    %v36 = vld [vmem:[#allocation2 + $0x18] sm:$0xff]
    %v37 = vld [vmem:[#allocation2 + $0x20] sm:$0xff]
    %v38 = vld [vmem:[#allocation2 + $0x28] sm:$0xf]
    %v39 = vld [vmem:[#allocation2 + $0x30] sm:$0xff]
    %v40 = vld [vmem:[#allocation2 + $0x38] sm:$0xff]
    %v41 = vld [vmem:[#allocation2 + $0x40] sm:$0xf]
    %v42 = vld [vmem:[#allocation2 + $0x48] sm:$0xff]
    %v43 = vld [vmem:[#allocation2 + $0x50] sm:$0xff]
    %v44 = vld [vmem:[#allocation2 + $0x58] sm:$0xf]
    %v45 = vld [vmem:[#allocation2 + $0x60] sm:$0xff]
    %v46 = vld [vmem:[#allocation2 + $0x68] sm:$0xff]
    %v47 = vld [vmem:[#allocation2 + $0x70] sm:$0xf]
    %v48 = vld [vmem:[#allocation2 + $0x78] sm:$0xff]
    %v49 = vld [vmem:[#allocation2 + $0x80] sm:$0xff]
    %v50 = vld [vmem:[#allocation2 + $0x88] sm:$0xf]
    %v51 = vld [vmem:[#allocation2 + $0x90] sm:$0xff]
    %v52 = vld [vmem:[#allocation2 + $0x98] sm:$0xff]
    %v53 = vld [vmem:[#allocation2 + $0xa0] sm:$0xf]
    %v54 = vld [vmem:[#allocation2 + $0xa8] sm:$0xff]
    %v55 = vld [vmem:[#allocation2 + $0xb0] sm:$0xff]
    %v56 = vld [vmem:[#allocation2 + $0xb8] sm:$0xf]
    %v57 = vld [vmem:[#allocation2 + $0xc0] sm:$0xff]
    %v58 = vld [vmem:[#allocation2 + $0xc8] sm:$0xff]
    %v59 = vld [vmem:[#allocation2 + $0xd0] sm:$0xf]
    %v60 = vld [vmem:[#allocation2 + $0xd8] sm:$0xff]
    %v61 = vld [vmem:[#allocation2 + $0xe0] sm:$0xff]
    %v62 = vld [vmem:[#allocation2 + $0xe8] sm:$0xf]
    %v63 = vld [vmem:[%s0] sm:$0x1]
    %65 = vset.pattern.permute.xlu0 0
    %66 = vperm.xlu0 %65, %v30
    %v67 = vpop.permute.xlu0 %66
    %70 = vset.pattern.permute.xlu0 0
    %71 = vperm.xlu0 %70, %v31
    %v72 = vpop.permute.xlu0 %71
    %75 = vset.pattern.permute.xlu0 0
    %76 = vperm.xlu0 %75, %v32
    %v77 = vpop.permute.xlu0 %76
    %v80 = vperm.slane %v63, 0
    %v82 = vmul.f32 %v67, %v80
    %v83 = vmul.f32 %v72, %v80
    %v84 = vmul.f32 %v77, %v80
    %85 = vset.pattern.permute.xlu0 1
    %86 = vperm.xlu0 %85, %v30
    %v87 = vpop.permute.xlu0 %86
    %89 = vset.pattern.permute.xlu0 1
    %90 = vperm.xlu0 %89, %v31
    %v91 = vpop.permute.xlu0 %90
    %93 = vset.pattern.permute.xlu0 1
    %94 = vperm.xlu0 %93, %v32
    %v95 = vpop.permute.xlu0 %94
    %v97 = vadd.f32 %v82, %v87
    %v98 = vadd.f32 %v83, %v91
    %v99 = vadd.f32 %v84, %v95
    %v100 = vmax.f32 %v97, 0.0
    %v101 = vmax.f32 %v98, 0.0
    %v102 = vmax.f32 %v99, 0.0
    %v103 = vand.u32 2147483647, %v97
    %v104 = vand.u32 2147483647, %v98
    %v105 = vand.u32 2147483647, %v99
    %v106 = vsub.f32 0.0, %v103
    %v107 = vsub.f32 0.0, %v104
    %v108 = vsub.f32 0.0, %v105
    %v109 = vmul.f32 %v106, 1.442695
    %v110 = vpow.pop %v109
    %v111 = vmul.f32 %v107, 1.442695
    %v112 = vpow.pop %v111
    %v113 = vmul.f32 %v108, 1.442695
    %v114 = vpow.pop %v113
    %v115 = vadd.f32 %v110, 1.0
    %v116 = vlog2.pop %v115
    %v117 = vmul.f32 %v116, 0.6931472
    %v118 = vmul.f32 -0.5, %v110
    %v119 = vadd.f32 %v118, 1.0
    %v120 = vmul.f32 %v119, %v110
    %v121 = vand.u32 2147483647, %v110
    %vm122 = vcmp.lt.f32.partialorder %v121, 0.0004427343
    %v123 = vsel %vm122, %v120, %v117
    %v124 = vadd.f32 %v112, 1.0
    %v125 = vlog2.pop %v124
    %v126 = vmul.f32 %v125, 0.6931472
    %v127 = vmul.f32 -0.5, %v112
    %v128 = vadd.f32 %v127, 1.0
    %v129 = vmul.f32 %v128, %v112
    %v130 = vand.u32 2147483647, %v112
    %vm131 = vcmp.lt.f32.partialorder %v130, 0.0004427343
    %v132 = vsel %vm131, %v129, %v126
    %v133 = vadd.f32 %v114, 1.0
    %v134 = vlog2.pop %v133
    %v135 = vmul.f32 %v134, 0.6931472
    %v136 = vmul.f32 -0.5, %v114
    %v137 = vadd.f32 %v136, 1.0
    %v138 = vmul.f32 %v137, %v114
    %v139 = vand.u32 2147483647, %v114
    %vm140 = vcmp.lt.f32.partialorder %v139, 0.0004427343
    %v141 = vsel %vm140, %v138, %v135
    %v142 = vadd.f32 %v100, %v123
    %v143 = vadd.f32 %v101, %v132
    %v144 = vadd.f32 %v102, %v141
    %145 = vset.pattern.permute.xlu0 2
    %146 = vperm.xlu0 %145, %v30
    %v147 = vpop.permute.xlu0 %146
    %149 = vset.pattern.permute.xlu0 2
    %150 = vperm.xlu0 %149, %v31
    %v151 = vpop.permute.xlu0 %150
    %153 = vset.pattern.permute.xlu0 2
    %154 = vperm.xlu0 %153, %v32
    %v155 = vpop.permute.xlu0 %154
    %vm157 = vcmask 162816
    %v159 = vsel %vm157, %v33, 0
    %v162 = vsel %vm157, %v34, 0
    %v165 = vsel %vm157, %v35, 0
    %vm167 = vcmask 1043456
    %v169 = vsel %vm167, %v144, 0
    %171 = vmatpush.msra.mxu0 0.0
    %172 = vmatpush.msra.mxu0 0.0
    %173 = vmatpush.msra.mxu0 0.0
    %174 = vmatpush.msra.mxu0 0.0
    %175 = vmatpush.msra.mxu0 0.0
    %176 = vmatpush.msra.mxu0 0.0
    %177 = vmatpush.msra.mxu0 0.0
    %178 = vmatpush.msra.mxu0 0.0
    %179 = vmatpush.msra.mxu0 0.0
    %180 = vmatpush.msra.mxu0 0.0
    %181 = vmatpush.msra.mxu0 0.0
    %182 = vmatpush.msra.mxu0 0.0
    %183 = vmatpush.msra.mxu0 0.0
    %184 = vmatpush.msra.mxu0 %v169
    %185 = vmatpush.msra.mxu0 %v143
    %186 = vmatpush.msra.mxu0 %v142
    %187 = vmatmul.f32.gmra.mxu0 %v159
    %v188 = vpop.f32.mrf.mxu0
    %v189 = vadd.f32 %v147, %v188
    %190 = vmatmul.f32.gmra.mxu0 %v162
    %v191 = vpop.f32.mrf.mxu0
    %v192 = vadd.f32 %v151, %v191
    %193 = vmatmul.f32.gmra.mxu0 %v165
    %v194 = vpop.f32.mrf.mxu0
    %v195 = vadd.f32 %v155, %v194
    %196 = vdwg.mxu0
    %v197 = vmax.f32 %v189, 0.0
    %v198 = vmax.f32 %v192, 0.0
    %v199 = vmax.f32 %v195, 0.0
    %v200 = vand.u32 2147483647, %v189
    %v201 = vand.u32 2147483647, %v192
    %v202 = vand.u32 2147483647, %v195
    %v203 = vsub.f32 0.0, %v200
    %v204 = vsub.f32 0.0, %v201
    %v205 = vsub.f32 0.0, %v202
    %v206 = vmul.f32 %v203, 1.442695
    %v207 = vpow.pop %v206
    %v208 = vmul.f32 %v204, 1.442695
    %v209 = vpow.pop %v208
    %v210 = vmul.f32 %v205, 1.442695
    %v211 = vpow.pop %v210
    %v212 = vadd.f32 %v207, 1.0
    %v213 = vlog2.pop %v212
    %v214 = vmul.f32 %v213, 0.6931472
    %v215 = vmul.f32 -0.5, %v207
    %v216 = vadd.f32 %v215, 1.0
    %v217 = vmul.f32 %v216, %v207
    %v218 = vand.u32 2147483647, %v207
    %vm219 = vcmp.lt.f32.partialorder %v218, 0.0004427343
    %v220 = vsel %vm219, %v217, %v214
    %v221 = vadd.f32 %v209, 1.0
    %v222 = vlog2.pop %v221
    %v223 = vmul.f32 %v222, 0.6931472
    %v224 = vmul.f32 -0.5, %v209
    %v225 = vadd.f32 %v224, 1.0
    %v226 = vmul.f32 %v225, %v209
    %v227 = vand.u32 2147483647, %v209
    %vm228 = vcmp.lt.f32.partialorder %v227, 0.0004427343
    %v229 = vsel %vm228, %v226, %v223
    %v230 = vadd.f32 %v211, 1.0
    %v231 = vlog2.pop %v230
    %v232 = vmul.f32 %v231, 0.6931472
    %v233 = vmul.f32 -0.5, %v211
    %v234 = vadd.f32 %v233, 1.0
    %v235 = vmul.f32 %v234, %v211
    %v236 = vand.u32 2147483647, %v211
    %vm237 = vcmp.lt.f32.partialorder %v236, 0.0004427343
    %v238 = vsel %vm237, %v235, %v232
    %v239 = vadd.f32 %v197, %v220
    %v240 = vadd.f32 %v198, %v229
    %v241 = vadd.f32 %v199, %v238
    %242 = vset.pattern.permute.xlu0 3
    %243 = vperm.xlu0 %242, %v30
    %v244 = vpop.permute.xlu0 %243
    %246 = vset.pattern.permute.xlu0 3
    %247 = vperm.xlu0 %246, %v31
    %v248 = vpop.permute.xlu0 %247
    %250 = vset.pattern.permute.xlu0 3
    %251 = vperm.xlu0 %250, %v32
    %v252 = vpop.permute.xlu0 %251
    %v255 = vsel %vm157, %v36, 0
    %v258 = vsel %vm157, %v37, 0
    %v261 = vsel %vm157, %v38, 0
    %v264 = vsel %vm167, %v241, 0
    %266 = vmatpush.msra.mxu0 0.0
    %267 = vmatpush.msra.mxu0 0.0
    %268 = vmatpush.msra.mxu0 0.0
    %269 = vmatpush.msra.mxu0 0.0
    %270 = vmatpush.msra.mxu0 0.0
    %271 = vmatpush.msra.mxu0 0.0
    %272 = vmatpush.msra.mxu0 0.0
    %273 = vmatpush.msra.mxu0 0.0
    %274 = vmatpush.msra.mxu0 0.0
    %275 = vmatpush.msra.mxu0 0.0
    %276 = vmatpush.msra.mxu0 0.0
    %277 = vmatpush.msra.mxu0 0.0
    %278 = vmatpush.msra.mxu0 0.0
    %279 = vmatpush.msra.mxu0 %v264
    %280 = vmatpush.msra.mxu0 %v240
    %281 = vmatpush.msra.mxu0 %v239
    %282 = vmatmul.f32.gmra.mxu0 %v255
    %v283 = vpop.f32.mrf.mxu0
    %v284 = vadd.f32 %v244, %v283
    %285 = vmatmul.f32.gmra.mxu0 %v258
    %v286 = vpop.f32.mrf.mxu0
    %v287 = vadd.f32 %v248, %v286
    %288 = vmatmul.f32.gmra.mxu0 %v261
    %v289 = vpop.f32.mrf.mxu0
    %v290 = vadd.f32 %v252, %v289
    %291 = vdwg.mxu0
    %v292 = vmax.f32 %v284, 0.0
    %v293 = vmax.f32 %v287, 0.0
    %v294 = vmax.f32 %v290, 0.0
    %v295 = vand.u32 2147483647, %v284
    %v296 = vand.u32 2147483647, %v287
    %v297 = vand.u32 2147483647, %v290
    %v298 = vsub.f32 0.0, %v295
    %v299 = vsub.f32 0.0, %v296
    %v300 = vsub.f32 0.0, %v297
    %v301 = vmul.f32 %v298, 1.442695
    %v302 = vpow.pop %v301
    %v303 = vmul.f32 %v299, 1.442695
    %v304 = vpow.pop %v303
    %v305 = vmul.f32 %v300, 1.442695
    %v306 = vpow.pop %v305
    %v307 = vadd.f32 %v302, 1.0
    %v308 = vlog2.pop %v307
    %v309 = vmul.f32 %v308, 0.6931472
    %v310 = vmul.f32 -0.5, %v302
    %v311 = vadd.f32 %v310, 1.0
    %v312 = vmul.f32 %v311, %v302
    %v313 = vand.u32 2147483647, %v302
    %vm314 = vcmp.lt.f32.partialorder %v313, 0.0004427343
    %v315 = vsel %vm314, %v312, %v309
    %v316 = vadd.f32 %v304, 1.0
    %v317 = vlog2.pop %v316
    %v318 = vmul.f32 %v317, 0.6931472
    %v319 = vmul.f32 -0.5, %v304
    %v320 = vadd.f32 %v319, 1.0
    %v321 = vmul.f32 %v320, %v304
    %v322 = vand.u32 2147483647, %v304
    %vm323 = vcmp.lt.f32.partialorder %v322, 0.0004427343
    %v324 = vsel %vm323, %v321, %v318
    %v325 = vadd.f32 %v306, 1.0
    %v326 = vlog2.pop %v325
    %v327 = vmul.f32 %v326, 0.6931472
    %v328 = vmul.f32 -0.5, %v306
    %v329 = vadd.f32 %v328, 1.0
    %v330 = vmul.f32 %v329, %v306
    %v331 = vand.u32 2147483647, %v306
    %vm332 = vcmp.lt.f32.partialorder %v331, 0.0004427343
    %v333 = vsel %vm332, %v330, %v327
    %v334 = vadd.f32 %v292, %v315
    %v335 = vadd.f32 %v293, %v324
    %v336 = vadd.f32 %v294, %v333
    %337 = vset.pattern.permute.xlu0 4
    %338 = vperm.xlu0 %337, %v30
    %v339 = vpop.permute.xlu0 %338
    %341 = vset.pattern.permute.xlu0 4
    %342 = vperm.xlu0 %341, %v31
    %v343 = vpop.permute.xlu0 %342
    %345 = vset.pattern.permute.xlu0 4
    %346 = vperm.xlu0 %345, %v32
    %v347 = vpop.permute.xlu0 %346
    %v350 = vsel %vm157, %v39, 0
    %v353 = vsel %vm157, %v40, 0
    %v356 = vsel %vm157, %v41, 0
    %v359 = vsel %vm167, %v336, 0
    %361 = vmatpush.msra.mxu0 0.0
    %362 = vmatpush.msra.mxu0 0.0
    %363 = vmatpush.msra.mxu0 0.0
    %364 = vmatpush.msra.mxu0 0.0
    %365 = vmatpush.msra.mxu0 0.0
    %366 = vmatpush.msra.mxu0 0.0
    %367 = vmatpush.msra.mxu0 0.0
    %368 = vmatpush.msra.mxu0 0.0
    %369 = vmatpush.msra.mxu0 0.0
    %370 = vmatpush.msra.mxu0 0.0
    %371 = vmatpush.msra.mxu0 0.0
    %372 = vmatpush.msra.mxu0 0.0
    %373 = vmatpush.msra.mxu0 0.0
    %374 = vmatpush.msra.mxu0 %v359
    %375 = vmatpush.msra.mxu0 %v335
    %376 = vmatpush.msra.mxu0 %v334
    %377 = vmatmul.f32.gmra.mxu0 %v350
    %v378 = vpop.f32.mrf.mxu0
    %v379 = vadd.f32 %v339, %v378
    %380 = vmatmul.f32.gmra.mxu0 %v353
    %v381 = vpop.f32.mrf.mxu0
    %v382 = vadd.f32 %v343, %v381
    %383 = vmatmul.f32.gmra.mxu0 %v356
    %v384 = vpop.f32.mrf.mxu0
    %v385 = vadd.f32 %v347, %v384
    %386 = vdwg.mxu0
    %v387 = vmax.f32 %v379, 0.0
    %v388 = vmax.f32 %v382, 0.0
    %v389 = vmax.f32 %v385, 0.0
    %v390 = vand.u32 2147483647, %v379
    %v391 = vand.u32 2147483647, %v382
    %v392 = vand.u32 2147483647, %v385
    %v393 = vsub.f32 0.0, %v390
    %v394 = vsub.f32 0.0, %v391
    %v395 = vsub.f32 0.0, %v392
    %v396 = vmul.f32 %v393, 1.442695
    %v397 = vpow.pop %v396
    %v398 = vmul.f32 %v394, 1.442695
    %v399 = vpow.pop %v398
    %v400 = vmul.f32 %v395, 1.442695
    %v401 = vpow.pop %v400
    %v402 = vadd.f32 %v397, 1.0
    %v403 = vlog2.pop %v402
    %v404 = vmul.f32 %v403, 0.6931472
    %v405 = vmul.f32 -0.5, %v397
    %v406 = vadd.f32 %v405, 1.0
    %v407 = vmul.f32 %v406, %v397
    %v408 = vand.u32 2147483647, %v397
    %vm409 = vcmp.lt.f32.partialorder %v408, 0.0004427343
    %v410 = vsel %vm409, %v407, %v404
    %v411 = vadd.f32 %v399, 1.0
    %v412 = vlog2.pop %v411
    %v413 = vmul.f32 %v412, 0.6931472
    %v414 = vmul.f32 -0.5, %v399
    %v415 = vadd.f32 %v414, 1.0
    %v416 = vmul.f32 %v415, %v399
    %v417 = vand.u32 2147483647, %v399
    %vm418 = vcmp.lt.f32.partialorder %v417, 0.0004427343
    %v419 = vsel %vm418, %v416, %v413
    %v420 = vadd.f32 %v401, 1.0
    %v421 = vlog2.pop %v420
    %v422 = vmul.f32 %v421, 0.6931472
    %v423 = vmul.f32 -0.5, %v401
    %v424 = vadd.f32 %v423, 1.0
    %v425 = vmul.f32 %v424, %v401
    %v426 = vand.u32 2147483647, %v401
    %vm427 = vcmp.lt.f32.partialorder %v426, 0.0004427343
    %v428 = vsel %vm427, %v425, %v422
    %v429 = vadd.f32 %v387, %v410
    %v430 = vadd.f32 %v388, %v419
    %v431 = vadd.f32 %v389, %v428
    %432 = vset.pattern.permute.xlu0 5
    %433 = vperm.xlu0 %432, %v30
    %v434 = vpop.permute.xlu0 %433
    %436 = vset.pattern.permute.xlu0 5
    %437 = vperm.xlu0 %436, %v31
    %v438 = vpop.permute.xlu0 %437
    %440 = vset.pattern.permute.xlu0 5
    %441 = vperm.xlu0 %440, %v32
    %v442 = vpop.permute.xlu0 %441
    %v445 = vsel %vm157, %v42, 0
    %v448 = vsel %vm157, %v43, 0
    %v451 = vsel %vm157, %v44, 0
    %v454 = vsel %vm167, %v431, 0
    %456 = vmatpush.msra.mxu0 0.0
    %457 = vmatpush.msra.mxu0 0.0
    %458 = vmatpush.msra.mxu0 0.0
    %459 = vmatpush.msra.mxu0 0.0
    %460 = vmatpush.msra.mxu0 0.0
    %461 = vmatpush.msra.mxu0 0.0
    %462 = vmatpush.msra.mxu0 0.0
    %463 = vmatpush.msra.mxu0 0.0
    %464 = vmatpush.msra.mxu0 0.0
    %465 = vmatpush.msra.mxu0 0.0
    %466 = vmatpush.msra.mxu0 0.0
    %467 = vmatpush.msra.mxu0 0.0
    %468 = vmatpush.msra.mxu0 0.0
    %469 = vmatpush.msra.mxu0 %v454
    %470 = vmatpush.msra.mxu0 %v430
    %471 = vmatpush.msra.mxu0 %v429
    %472 = vmatmul.f32.gmra.mxu0 %v445
    %v473 = vpop.f32.mrf.mxu0
    %v474 = vadd.f32 %v434, %v473
    %475 = vmatmul.f32.gmra.mxu0 %v448
    %v476 = vpop.f32.mrf.mxu0
    %v477 = vadd.f32 %v438, %v476
    %478 = vmatmul.f32.gmra.mxu0 %v451
    %v479 = vpop.f32.mrf.mxu0
    %v480 = vadd.f32 %v442, %v479
    %481 = vdwg.mxu0
    %v482 = vmax.f32 %v474, 0.0
    %v483 = vmax.f32 %v477, 0.0
    %v484 = vmax.f32 %v480, 0.0
    %v485 = vand.u32 2147483647, %v474
    %v486 = vand.u32 2147483647, %v477
    %v487 = vand.u32 2147483647, %v480
    %v488 = vsub.f32 0.0, %v485
    %v489 = vsub.f32 0.0, %v486
    %v490 = vsub.f32 0.0, %v487
    %v491 = vmul.f32 %v488, 1.442695
    %v492 = vpow.pop %v491
    %v493 = vmul.f32 %v489, 1.442695
    %v494 = vpow.pop %v493
    %v495 = vmul.f32 %v490, 1.442695
    %v496 = vpow.pop %v495
    %v497 = vadd.f32 %v492, 1.0
    %v498 = vlog2.pop %v497
    %v499 = vmul.f32 %v498, 0.6931472
    %v500 = vmul.f32 -0.5, %v492
    %v501 = vadd.f32 %v500, 1.0
    %v502 = vmul.f32 %v501, %v492
    %v503 = vand.u32 2147483647, %v492
    %vm504 = vcmp.lt.f32.partialorder %v503, 0.0004427343
    %v505 = vsel %vm504, %v502, %v499
    %v506 = vadd.f32 %v494, 1.0
    %v507 = vlog2.pop %v506
    %v508 = vmul.f32 %v507, 0.6931472
    %v509 = vmul.f32 -0.5, %v494
    %v510 = vadd.f32 %v509, 1.0
    %v511 = vmul.f32 %v510, %v494
    %v512 = vand.u32 2147483647, %v494
    %vm513 = vcmp.lt.f32.partialorder %v512, 0.0004427343
    %v514 = vsel %vm513, %v511, %v508
    %v515 = vadd.f32 %v496, 1.0
    %v516 = vlog2.pop %v515
    %v517 = vmul.f32 %v516, 0.6931472
    %v518 = vmul.f32 -0.5, %v496
    %v519 = vadd.f32 %v518, 1.0
    %v520 = vmul.f32 %v519, %v496
    %v521 = vand.u32 2147483647, %v496
    %vm522 = vcmp.lt.f32.partialorder %v521, 0.0004427343
    %v523 = vsel %vm522, %v520, %v517
    %v524 = vadd.f32 %v482, %v505
    %v525 = vadd.f32 %v483, %v514
    %v526 = vadd.f32 %v484, %v523
    %527 = vset.pattern.permute.xlu0 6
    %528 = vperm.xlu0 %527, %v30
    %v529 = vpop.permute.xlu0 %528
    %531 = vset.pattern.permute.xlu0 6
    %532 = vperm.xlu0 %531, %v31
    %v533 = vpop.permute.xlu0 %532
    %535 = vset.pattern.permute.xlu0 6
    %536 = vperm.xlu0 %535, %v32
    %v537 = vpop.permute.xlu0 %536
    %v540 = vsel %vm157, %v45, 0
    %v543 = vsel %vm157, %v46, 0
    %v546 = vsel %vm157, %v47, 0
    %v549 = vsel %vm167, %v526, 0
    %551 = vmatpush.msra.mxu0 0.0
    %552 = vmatpush.msra.mxu0 0.0
    %553 = vmatpush.msra.mxu0 0.0
    %554 = vmatpush.msra.mxu0 0.0
    %555 = vmatpush.msra.mxu0 0.0
    %556 = vmatpush.msra.mxu0 0.0
    %557 = vmatpush.msra.mxu0 0.0
    %558 = vmatpush.msra.mxu0 0.0
    %559 = vmatpush.msra.mxu0 0.0
    %560 = vmatpush.msra.mxu0 0.0
    %561 = vmatpush.msra.mxu0 0.0
    %562 = vmatpush.msra.mxu0 0.0
    %563 = vmatpush.msra.mxu0 0.0
    %564 = vmatpush.msra.mxu0 %v549
    %565 = vmatpush.msra.mxu0 %v525
    %566 = vmatpush.msra.mxu0 %v524
    %567 = vmatmul.f32.gmra.mxu0 %v540
    %v568 = vpop.f32.mrf.mxu0
    %v569 = vadd.f32 %v529, %v568
    %570 = vmatmul.f32.gmra.mxu0 %v543
    %v571 = vpop.f32.mrf.mxu0
    %v572 = vadd.f32 %v533, %v571
    %573 = vmatmul.f32.gmra.mxu0 %v546
    %v574 = vpop.f32.mrf.mxu0
    %v575 = vadd.f32 %v537, %v574
    %576 = vdwg.mxu0
    %v577 = vmax.f32 %v569, 0.0
    %v578 = vmax.f32 %v572, 0.0
    %v579 = vmax.f32 %v575, 0.0
    %v580 = vand.u32 2147483647, %v569
    %v581 = vand.u32 2147483647, %v572
    %v582 = vand.u32 2147483647, %v575
    %v583 = vsub.f32 0.0, %v580
    %v584 = vsub.f32 0.0, %v581
    %v585 = vsub.f32 0.0, %v582
    %v586 = vmul.f32 %v583, 1.442695
    %v587 = vpow.pop %v586
    %v588 = vmul.f32 %v584, 1.442695
    %v589 = vpow.pop %v588
    %v590 = vmul.f32 %v585, 1.442695
    %v591 = vpow.pop %v590
    %v592 = vadd.f32 %v587, 1.0
    %v593 = vlog2.pop %v592
    %v594 = vmul.f32 %v593, 0.6931472
    %v595 = vmul.f32 -0.5, %v587
    %v596 = vadd.f32 %v595, 1.0
    %v597 = vmul.f32 %v596, %v587
    %v598 = vand.u32 2147483647, %v587
    %vm599 = vcmp.lt.f32.partialorder %v598, 0.0004427343
    %v600 = vsel %vm599, %v597, %v594
    %v601 = vadd.f32 %v589, 1.0
    %v602 = vlog2.pop %v601
    %v603 = vmul.f32 %v602, 0.6931472
    %v604 = vmul.f32 -0.5, %v589
    %v605 = vadd.f32 %v604, 1.0
    %v606 = vmul.f32 %v605, %v589
    %v607 = vand.u32 2147483647, %v589
    %vm608 = vcmp.lt.f32.partialorder %v607, 0.0004427343
    %v609 = vsel %vm608, %v606, %v603
    %v610 = vadd.f32 %v591, 1.0
    %v611 = vlog2.pop %v610
    %v612 = vmul.f32 %v611, 0.6931472
    %v613 = vmul.f32 -0.5, %v591
    %v614 = vadd.f32 %v613, 1.0
    %v615 = vmul.f32 %v614, %v591
    %v616 = vand.u32 2147483647, %v591
    %vm617 = vcmp.lt.f32.partialorder %v616, 0.0004427343
    %v618 = vsel %vm617, %v615, %v612
    %v619 = vadd.f32 %v577, %v600
    %v620 = vadd.f32 %v578, %v609
    %v621 = vadd.f32 %v579, %v618
    %622 = vset.pattern.permute.xlu0 7
    %623 = vperm.xlu0 %622, %v30
    %v624 = vpop.permute.xlu0 %623
    %626 = vset.pattern.permute.xlu0 7
    %627 = vperm.xlu0 %626, %v31
    %v628 = vpop.permute.xlu0 %627
    %630 = vset.pattern.permute.xlu0 7
    %631 = vperm.xlu0 %630, %v32
    %v632 = vpop.permute.xlu0 %631
    %v635 = vsel %vm157, %v48, 0
    %v638 = vsel %vm157, %v49, 0
    %v641 = vsel %vm157, %v50, 0
    %v644 = vsel %vm167, %v621, 0
    %646 = vmatpush.msra.mxu0 0.0
    %647 = vmatpush.msra.mxu0 0.0
    %648 = vmatpush.msra.mxu0 0.0
    %649 = vmatpush.msra.mxu0 0.0
    %650 = vmatpush.msra.mxu0 0.0
    %651 = vmatpush.msra.mxu0 0.0
    %652 = vmatpush.msra.mxu0 0.0
    %653 = vmatpush.msra.mxu0 0.0
    %654 = vmatpush.msra.mxu0 0.0
    %655 = vmatpush.msra.mxu0 0.0
    %656 = vmatpush.msra.mxu0 0.0
    %657 = vmatpush.msra.mxu0 0.0
    %658 = vmatpush.msra.mxu0 0.0
    %659 = vmatpush.msra.mxu0 %v644
    %660 = vmatpush.msra.mxu0 %v620
    %661 = vmatpush.msra.mxu0 %v619
    %662 = vmatmul.f32.gmra.mxu0 %v635
    %v663 = vpop.f32.mrf.mxu0
    %v664 = vadd.f32 %v624, %v663
    %665 = vmatmul.f32.gmra.mxu0 %v638
    %v666 = vpop.f32.mrf.mxu0
    %v667 = vadd.f32 %v628, %v666
    %668 = vmatmul.f32.gmra.mxu0 %v641
    %v669 = vpop.f32.mrf.mxu0
    %v670 = vadd.f32 %v632, %v669
    %671 = vdwg.mxu0
    %v672 = vmax.f32 %v664, 0.0
    %v673 = vmax.f32 %v667, 0.0
    %v674 = vmax.f32 %v670, 0.0
    %v675 = vand.u32 2147483647, %v664
    %v676 = vand.u32 2147483647, %v667
    %v677 = vand.u32 2147483647, %v670
    %v678 = vsub.f32 0.0, %v675
    %v679 = vsub.f32 0.0, %v676
    %v680 = vsub.f32 0.0, %v677
    %v681 = vmul.f32 %v678, 1.442695
    %v682 = vpow.pop %v681
    %v683 = vmul.f32 %v679, 1.442695
    %v684 = vpow.pop %v683
    %v685 = vmul.f32 %v680, 1.442695
    %v686 = vpow.pop %v685
    %v687 = vadd.f32 %v682, 1.0
    %v688 = vlog2.pop %v687
    %v689 = vmul.f32 %v688, 0.6931472
    %v690 = vmul.f32 -0.5, %v682
    %v691 = vadd.f32 %v690, 1.0
    %v692 = vmul.f32 %v691, %v682
    %v693 = vand.u32 2147483647, %v682
    %vm694 = vcmp.lt.f32.partialorder %v693, 0.0004427343
    %v695 = vsel %vm694, %v692, %v689
    %v696 = vadd.f32 %v684, 1.0
    %v697 = vlog2.pop %v696
    %v698 = vmul.f32 %v697, 0.6931472
    %v699 = vmul.f32 -0.5, %v684
    %v700 = vadd.f32 %v699, 1.0
    %v701 = vmul.f32 %v700, %v684
    %v702 = vand.u32 2147483647, %v684
    %vm703 = vcmp.lt.f32.partialorder %v702, 0.0004427343
    %v704 = vsel %vm703, %v701, %v698
    %v705 = vadd.f32 %v686, 1.0
    %v706 = vlog2.pop %v705
    %v707 = vmul.f32 %v706, 0.6931472
    %v708 = vmul.f32 -0.5, %v686
    %v709 = vadd.f32 %v708, 1.0
    %v710 = vmul.f32 %v709, %v686
    %v711 = vand.u32 2147483647, %v686
    %vm712 = vcmp.lt.f32.partialorder %v711, 0.0004427343
    %v713 = vsel %vm712, %v710, %v707
    %v714 = vadd.f32 %v672, %v695
    %v715 = vadd.f32 %v673, %v704
    %v716 = vadd.f32 %v674, %v713
    %717 = vset.pattern.permute.xlu0 8
    %718 = vperm.xlu0 %717, %v30
    %v719 = vpop.permute.xlu0 %718
    %721 = vset.pattern.permute.xlu0 8
    %722 = vperm.xlu0 %721, %v31
    %v723 = vpop.permute.xlu0 %722
    %725 = vset.pattern.permute.xlu0 8
    %726 = vperm.xlu0 %725, %v32
    %v727 = vpop.permute.xlu0 %726
    %v730 = vsel %vm157, %v51, 0
    %v733 = vsel %vm157, %v52, 0
    %v736 = vsel %vm157, %v53, 0
    %v739 = vsel %vm167, %v716, 0
    %741 = vmatpush.msra.mxu0 0.0
    %742 = vmatpush.msra.mxu0 0.0
    %743 = vmatpush.msra.mxu0 0.0
    %744 = vmatpush.msra.mxu0 0.0
    %745 = vmatpush.msra.mxu0 0.0
    %746 = vmatpush.msra.mxu0 0.0
    %747 = vmatpush.msra.mxu0 0.0
    %748 = vmatpush.msra.mxu0 0.0
    %749 = vmatpush.msra.mxu0 0.0
    %750 = vmatpush.msra.mxu0 0.0
    %751 = vmatpush.msra.mxu0 0.0
    %752 = vmatpush.msra.mxu0 0.0
    %753 = vmatpush.msra.mxu0 0.0
    %754 = vmatpush.msra.mxu0 %v739
    %755 = vmatpush.msra.mxu0 %v715
    %756 = vmatpush.msra.mxu0 %v714
    %757 = vmatmul.f32.gmra.mxu0 %v730
    %v758 = vpop.f32.mrf.mxu0
    %v759 = vadd.f32 %v719, %v758
    %760 = vmatmul.f32.gmra.mxu0 %v733
    %v761 = vpop.f32.mrf.mxu0
    %v762 = vadd.f32 %v723, %v761
    %763 = vmatmul.f32.gmra.mxu0 %v736
    %v764 = vpop.f32.mrf.mxu0
    %v765 = vadd.f32 %v727, %v764
    %766 = vdwg.mxu0
    %v767 = vmax.f32 %v759, 0.0
    %v768 = vmax.f32 %v762, 0.0
    %v769 = vmax.f32 %v765, 0.0
    %v770 = vand.u32 2147483647, %v759
    %v771 = vand.u32 2147483647, %v762
    %v772 = vand.u32 2147483647, %v765
    %v773 = vsub.f32 0.0, %v770
    %v774 = vsub.f32 0.0, %v771
    %v775 = vsub.f32 0.0, %v772
    %v776 = vmul.f32 %v773, 1.442695
    %v777 = vpow.pop %v776
    %v778 = vmul.f32 %v774, 1.442695
    %v779 = vpow.pop %v778
    %v780 = vmul.f32 %v775, 1.442695
    %v781 = vpow.pop %v780
    %v782 = vadd.f32 %v777, 1.0
    %v783 = vlog2.pop %v782
    %v784 = vmul.f32 %v783, 0.6931472
    %v785 = vmul.f32 -0.5, %v777
    %v786 = vadd.f32 %v785, 1.0
    %v787 = vmul.f32 %v786, %v777
    %v788 = vand.u32 2147483647, %v777
    %vm789 = vcmp.lt.f32.partialorder %v788, 0.0004427343
    %v790 = vsel %vm789, %v787, %v784
    %v791 = vadd.f32 %v779, 1.0
    %v792 = vlog2.pop %v791
    %v793 = vmul.f32 %v792, 0.6931472
    %v794 = vmul.f32 -0.5, %v779
    %v795 = vadd.f32 %v794, 1.0
    %v796 = vmul.f32 %v795, %v779
    %v797 = vand.u32 2147483647, %v779
    %vm798 = vcmp.lt.f32.partialorder %v797, 0.0004427343
    %v799 = vsel %vm798, %v796, %v793
    %v800 = vadd.f32 %v781, 1.0
    %v801 = vlog2.pop %v800
    %v802 = vmul.f32 %v801, 0.6931472
    %v803 = vmul.f32 -0.5, %v781
    %v804 = vadd.f32 %v803, 1.0
    %v805 = vmul.f32 %v804, %v781
    %v806 = vand.u32 2147483647, %v781
    %vm807 = vcmp.lt.f32.partialorder %v806, 0.0004427343
    %v808 = vsel %vm807, %v805, %v802
    %v809 = vadd.f32 %v767, %v790
    %v810 = vadd.f32 %v768, %v799
    %v811 = vadd.f32 %v769, %v808
    %812 = vset.pattern.permute.xlu0 9
    %813 = vperm.xlu0 %812, %v30
    %v814 = vpop.permute.xlu0 %813
    %816 = vset.pattern.permute.xlu0 9
    %817 = vperm.xlu0 %816, %v31
    %v818 = vpop.permute.xlu0 %817
    %820 = vset.pattern.permute.xlu0 9
    %821 = vperm.xlu0 %820, %v32
    %v822 = vpop.permute.xlu0 %821
    %v825 = vsel %vm157, %v54, 0
    %v828 = vsel %vm157, %v55, 0
    %v831 = vsel %vm157, %v56, 0
    %v834 = vsel %vm167, %v811, 0
    %836 = vmatpush.msra.mxu0 0.0
    %837 = vmatpush.msra.mxu0 0.0
    %838 = vmatpush.msra.mxu0 0.0
    %839 = vmatpush.msra.mxu0 0.0
    %840 = vmatpush.msra.mxu0 0.0
    %841 = vmatpush.msra.mxu0 0.0
    %842 = vmatpush.msra.mxu0 0.0
    %843 = vmatpush.msra.mxu0 0.0
    %844 = vmatpush.msra.mxu0 0.0
    %845 = vmatpush.msra.mxu0 0.0
    %846 = vmatpush.msra.mxu0 0.0
    %847 = vmatpush.msra.mxu0 0.0
    %848 = vmatpush.msra.mxu0 0.0
    %849 = vmatpush.msra.mxu0 %v834
    %850 = vmatpush.msra.mxu0 %v810
    %851 = vmatpush.msra.mxu0 %v809
    %852 = vmatmul.f32.gmra.mxu0 %v825
    %v853 = vpop.f32.mrf.mxu0
    %v854 = vadd.f32 %v814, %v853
    %855 = vmatmul.f32.gmra.mxu0 %v828
    %v856 = vpop.f32.mrf.mxu0
    %v857 = vadd.f32 %v818, %v856
    %858 = vmatmul.f32.gmra.mxu0 %v831
    %v859 = vpop.f32.mrf.mxu0
    %v860 = vadd.f32 %v822, %v859
    %861 = vdwg.mxu0
    %v862 = vmax.f32 %v854, 0.0
    %v863 = vmax.f32 %v857, 0.0
    %v864 = vmax.f32 %v860, 0.0
    %v865 = vand.u32 2147483647, %v854
    %v866 = vand.u32 2147483647, %v857
    %v867 = vand.u32 2147483647, %v860
    %v868 = vsub.f32 0.0, %v865
    %v869 = vsub.f32 0.0, %v866
    %v870 = vsub.f32 0.0, %v867
    %v871 = vmul.f32 %v868, 1.442695
    %v872 = vpow.pop %v871
    %v873 = vmul.f32 %v869, 1.442695
    %v874 = vpow.pop %v873
    %v875 = vmul.f32 %v870, 1.442695
    %v876 = vpow.pop %v875
    %v877 = vadd.f32 %v872, 1.0
    %v878 = vlog2.pop %v877
    %v879 = vmul.f32 %v878, 0.6931472
    %v880 = vmul.f32 -0.5, %v872
    %v881 = vadd.f32 %v880, 1.0
    %v882 = vmul.f32 %v881, %v872
    %v883 = vand.u32 2147483647, %v872
    %vm884 = vcmp.lt.f32.partialorder %v883, 0.0004427343
    %v885 = vsel %vm884, %v882, %v879
    %v886 = vadd.f32 %v874, 1.0
    %v887 = vlog2.pop %v886
    %v888 = vmul.f32 %v887, 0.6931472
    %v889 = vmul.f32 -0.5, %v874
    %v890 = vadd.f32 %v889, 1.0
    %v891 = vmul.f32 %v890, %v874
    %v892 = vand.u32 2147483647, %v874
    %vm893 = vcmp.lt.f32.partialorder %v892, 0.0004427343
    %v894 = vsel %vm893, %v891, %v888
    %v895 = vadd.f32 %v876, 1.0
    %v896 = vlog2.pop %v895
    %v897 = vmul.f32 %v896, 0.6931472
    %v898 = vmul.f32 -0.5, %v876
    %v899 = vadd.f32 %v898, 1.0
    %v900 = vmul.f32 %v899, %v876
    %v901 = vand.u32 2147483647, %v876
    %vm902 = vcmp.lt.f32.partialorder %v901, 0.0004427343
    %v903 = vsel %vm902, %v900, %v897
    %v904 = vadd.f32 %v862, %v885
    %v905 = vadd.f32 %v863, %v894
    %v906 = vadd.f32 %v864, %v903
    %907 = vset.pattern.permute.xlu0 10
    %908 = vperm.xlu0 %907, %v30
    %v909 = vpop.permute.xlu0 %908
    %911 = vset.pattern.permute.xlu0 10
    %912 = vperm.xlu0 %911, %v31
    %v913 = vpop.permute.xlu0 %912
    %915 = vset.pattern.permute.xlu0 10
    %916 = vperm.xlu0 %915, %v32
    %v917 = vpop.permute.xlu0 %916
    %v920 = vsel %vm157, %v57, 0
    %v923 = vsel %vm157, %v58, 0
    %v926 = vsel %vm157, %v59, 0
    %v929 = vsel %vm167, %v906, 0
    %931 = vmatpush.msra.mxu0 0.0
    %932 = vmatpush.msra.mxu0 0.0
    %933 = vmatpush.msra.mxu0 0.0
    %934 = vmatpush.msra.mxu0 0.0
    %935 = vmatpush.msra.mxu0 0.0
    %936 = vmatpush.msra.mxu0 0.0
    %937 = vmatpush.msra.mxu0 0.0
    %938 = vmatpush.msra.mxu0 0.0
    %939 = vmatpush.msra.mxu0 0.0
    %940 = vmatpush.msra.mxu0 0.0
    %941 = vmatpush.msra.mxu0 0.0
    %942 = vmatpush.msra.mxu0 0.0
    %943 = vmatpush.msra.mxu0 0.0
    %944 = vmatpush.msra.mxu0 %v929
    %945 = vmatpush.msra.mxu0 %v905
    %946 = vmatpush.msra.mxu0 %v904
    %947 = vmatmul.f32.gmra.mxu0 %v920
    %v948 = vpop.f32.mrf.mxu0
    %v949 = vadd.f32 %v909, %v948
    %950 = vmatmul.f32.gmra.mxu0 %v923
    %v951 = vpop.f32.mrf.mxu0
    %v952 = vadd.f32 %v913, %v951
    %953 = vmatmul.f32.gmra.mxu0 %v926
    %v954 = vpop.f32.mrf.mxu0
    %v955 = vadd.f32 %v917, %v954
    %956 = vdwg.mxu0
    %v957 = vmax.f32 %v949, 0.0
    %v958 = vmax.f32 %v952, 0.0
    %v959 = vmax.f32 %v955, 0.0
    %v960 = vand.u32 2147483647, %v949
    %v961 = vand.u32 2147483647, %v952
    %v962 = vand.u32 2147483647, %v955
    %v963 = vsub.f32 0.0, %v960
    %v964 = vsub.f32 0.0, %v961
    %v965 = vsub.f32 0.0, %v962
    %v966 = vmul.f32 %v963, 1.442695
    %v967 = vpow.pop %v966
    %v968 = vmul.f32 %v964, 1.442695
    %v969 = vpow.pop %v968
    %v970 = vmul.f32 %v965, 1.442695
    %v971 = vpow.pop %v970
    %v972 = vadd.f32 %v967, 1.0
    %v973 = vlog2.pop %v972
    %v974 = vmul.f32 %v973, 0.6931472
    %v975 = vmul.f32 -0.5, %v967
    %v976 = vadd.f32 %v975, 1.0
    %v977 = vmul.f32 %v976, %v967
    %v978 = vand.u32 2147483647, %v967
    %vm979 = vcmp.lt.f32.partialorder %v978, 0.0004427343
    %v980 = vsel %vm979, %v977, %v974
    %v981 = vadd.f32 %v969, 1.0
    %v982 = vlog2.pop %v981
    %v983 = vmul.f32 %v982, 0.6931472
    %v984 = vmul.f32 -0.5, %v969
    %v985 = vadd.f32 %v984, 1.0
    %v986 = vmul.f32 %v985, %v969
    %v987 = vand.u32 2147483647, %v969
    %vm988 = vcmp.lt.f32.partialorder %v987, 0.0004427343
    %v989 = vsel %vm988, %v986, %v983
    %v990 = vadd.f32 %v971, 1.0
    %v991 = vlog2.pop %v990
    %v992 = vmul.f32 %v991, 0.6931472
    %v993 = vmul.f32 -0.5, %v971
    %v994 = vadd.f32 %v993, 1.0
    %v995 = vmul.f32 %v994, %v971
    %v996 = vand.u32 2147483647, %v971
    %vm997 = vcmp.lt.f32.partialorder %v996, 0.0004427343
    %v998 = vsel %vm997, %v995, %v992
    %v999 = vadd.f32 %v957, %v980
    %v1000 = vadd.f32 %v958, %v989
    %v1001 = vadd.f32 %v959, %v998
    %v1003 = vsel %vm157, %v60, 0
    %v1006 = vsel %vm157, %v61, 0
    %v1009 = vsel %vm157, %v62, 0
    %v1012 = vsel %vm167, %v1001, 0
    %1014 = vmatpush.msra.mxu0 0.0
    %1015 = vmatpush.msra.mxu0 0.0
    %1016 = vmatpush.msra.mxu0 0.0
    %1017 = vmatpush.msra.mxu0 0.0
    %1018 = vmatpush.msra.mxu0 0.0
    %1019 = vmatpush.msra.mxu0 0.0
    %1020 = vmatpush.msra.mxu0 0.0
    %1021 = vmatpush.msra.mxu0 0.0
    %1022 = vmatpush.msra.mxu0 0.0
    %1023 = vmatpush.msra.mxu0 0.0
    %1024 = vmatpush.msra.mxu0 0.0
    %1025 = vmatpush.msra.mxu0 0.0
    %1026 = vmatpush.msra.mxu0 0.0
    %1027 = vmatpush.msra.mxu0 %v1012
    %1028 = vmatpush.msra.mxu0 %v1000
    %1029 = vmatpush.msra.mxu0 %v999
    %1030 = vmatmul.f32.gmra.mxu0 %v1003
    %v1031 = vpop.f32.mrf.mxu0
    %v1032 = vadd.f32 0.0, %v1031
    %1033 = vmatmul.f32.gmra.mxu0 %v1006
    %v1034 = vpop.f32.mrf.mxu0
    %1035 = vmatmul.f32.gmra.mxu0 %v1009
    %v1036 = vpop.f32.mrf.mxu0
    %1037 = vdwg.mxu0
    %1038 = vset.pattern.permute.xlu0 11
    %1039 = vperm.xlu0 %1038, %v30
    %v1040 = vpop.permute.xlu0 %1039
    %v1042 = vadd.f32 %v1032, %v1040
    %v1043 = vsub.f32 1.0, %v63
    %v1045 = vperm.slane %v1043, 0
    %1047 = vset.pattern.permute.xlu0 12
    %1048 = vperm.xlu0 %1047, %v30
    %v1049 = vpop.permute.xlu0 %1048
    %v1051 = vmul.f32 %v1045, %v1049
    %1052 = vset.pattern.permute.xlu0 13
    %1053 = vperm.xlu0 %1052, %v30
    %v1054 = vpop.permute.xlu0 %1053
    %v1056 = vmul.f32 %v80, %v1054
    %v1057 = vadd.f32 %v1051, %v1056
    %v1058 = vmul.f32 %v63, %v1043
    %v1060 = vperm.slane %v1058, 0
    %v1062 = vmul.f32 %v1060, %v1042
    %v1063 = vadd.f32 %v1057, %v1062
    %1064 = vst [vmem:[%s3] sm:$0x3] %v1063
    // Predicated region
    $region18: #{pinn_apply.1} parent=1 // pred_check
      _
    $region19: #{pinn_apply.1} parent=1 // pred_check_branch
      %1066 = sbr.rel (0) target = $region21
    $region20: #{pinn_apply.1} parent=1 // pred_region
      _
    $region21: #{pinn_apply.1} parent=1 // pred_fallthru
      _
    // Predicated region
    $region22: #{pinn_apply.1} parent=1 // pred_check
      _
    $region23: #{pinn_apply.1} parent=1 // pred_check_branch
      %1068 = sbr.rel (0) target = $region25
    $region24: #{pinn_apply.1} parent=1 // pred_region
      _
    $region25: #{pinn_apply.1} parent=1 // pred_fallthru
      _
    %1069 = vsyncpa [#allocation3], 1

</llo_original>
